<compile_context>
chip_gen: v7x
topology: tpu7x:2x2x1
jax: 0.10.0
libtpu: 0.0.40
codegen_flags: <defaults>
</compile_context>

<pallas_src>
import functools

import jax
import jax.numpy as jnp
from jax import lax
from jax.experimental import pallas as pl
from jax.experimental.pallas import tpu as pltpu


def _round_up(n, m):
    return ((n + m - 1) // m) * m


def _cdiv(a, b):
    return (a + b - 1) // b


def _mode_tiling(modes1, modes2, modes3, lane_tile=512):
    """Fold the 4 corners onto the lane axis; pick a lane-dense tile so that
    padding waste is at most one 128-lane group per tile.
    Returns (mtot, mtot_padded, tm)."""
    mtot = 4 * modes1 * modes2 * modes3
    n_m = max(1, _cdiv(mtot, lane_tile))
    tm = _round_up(_cdiv(mtot, n_m), 128)
    mtot_pad = n_m * tm
    return mtot, mtot_pad, tm


def _choose_cout_tile(cout, b, cin, tm,
                      acc_budget=96 * 1024, w_tile_budget=4 * 1024 * 1024):
    """Largest Cout block such that the 3 f32 accumulators stay resident in
    vregs (no per-iteration spills) and each weight tile is small enough to
    double-buffer comfortably on v7x (64 MiB VMEM).  The block must be either
    the full Cout or a multiple of 8 (TPU sublane constraint)."""
    best = None
    for t in range(1, cout + 1):
        if cout % t:
            continue
        if t != cout and t % 8:
            continue
        acc_bytes = 3 * b * t * tm * 4
        w_tile_bytes = cin * t * tm * 4
        if acc_bytes <= acc_budget and w_tile_bytes <= w_tile_budget:
            if best is None or t > best:
                best = t
    if best is None:
        legal = [t for t in range(1, cout + 1)
                 if cout % t == 0 and (t == cout or t % 8 == 0)]
        best = min(legal)
    return best


# ---------------------------------------------------------------------------
# Pallas kernel: complex contraction  out[b,o,m] = sum_i a[i,b,m] * w[i,o,m]
# over one (mode-tile x Cout-tile) block.  Karatsuba 3-mult complex product:
#   t_rr = sum_i ar*wr,  t_ii = sum_i ai*wi,  t_x = sum_i (ar+ai)*(wr+wi)
#   out_re = t_rr - t_ii, out_im = t_x - t_rr - t_ii
# Only ONE per-iteration weight combo (wr+wi) is needed.
# ---------------------------------------------------------------------------
def _spectral_mul_kernel(ar_ref, ai_ref, wr_ref, wi_ref, or_ref, oi_ref):
    cin, b, tm = ar_ref.shape          # a blocks: (Cin, B, TM)
    tcout = wr_ref.shape[1]            # w blocks: (Cin, TCout, TM)

    zeros = jnp.zeros((b, tcout, tm), jnp.float32)

    def body(i, carry):
        t_rr, t_ii, t_x = carry
        ar_i = ar_ref[i]               # (B, TM)
        ai_i = ai_ref[i]               # (B, TM)
        wr_i = wr_ref[i]               # (TCout, TM)
        wi_i = wi_ref[i]               # (TCout, TM)
        t_rr = t_rr + ar_i[:, None, :] * wr_i[None, :, :]
        t_ii = t_ii + ai_i[:, None, :] * wi_i[None, :, :]
        t_x = t_x + (ar_i + ai_i)[:, None, :] * (wr_i + wi_i)[None, :, :]
        return t_rr, t_ii, t_x

    unroll = 4 if cin >= 4 else cin
    t_rr, t_ii, t_x = lax.fori_loop(0, cin, body, (zeros, zeros, zeros),
                                    unroll=unroll)
    or_ref[...] = t_rr - t_ii
    oi_ref[...] = t_x - t_rr - t_ii


def _compl_mul_folded(a_re, a_im, w_re, w_im, *, m_tile, cout_tile):
    """a_*: (Cin, B, Mtot) f32,  w_*: (Cin, Cout, Mtot) f32
       -> (out_re, out_im) each (B, Cout, Mtot) f32.
       Mtot % m_tile == 0 and Cout % cout_tile == 0."""
    cin, b, mtot = a_re.shape
    cout = w_re.shape[1]
    n_m = mtot // m_tile
    n_co = cout // cout_tile

    # Grid: m outer, cout inner -> activation blocks (constant along cout) are
    # not re-fetched while weight/output blocks stream.
    a_spec = pl.BlockSpec((cin, b, m_tile), lambda m, co: (0, 0, m))
    w_spec = pl.BlockSpec((cin, cout_tile, m_tile), lambda m, co: (0, co, m))
    o_spec = pl.BlockSpec((b, cout_tile, m_tile), lambda m, co: (0, co, m))

    # VMEM budget: double-buffered in/out tiles + accumulator scratch + slack,
    # capped below v7x's 64 MiB physical VMEM.
    in_tile_bytes = 4 * m_tile * (2 * cin * b + 2 * cin * cout_tile)
    out_tile_bytes = 4 * m_tile * (2 * b * cout_tile)
    acc_bytes = 4 * m_tile * (3 * b * cout_tile)
    vmem_limit = int(min(48 * 1024 * 1024,
                         max(8 * 1024 * 1024,
                             2 * (in_tile_bytes + out_tile_bytes)
                             + acc_bytes + 4 * 1024 * 1024)))

    return pl.pallas_call(
        _spectral_mul_kernel,
        grid=(n_m, n_co),
        in_specs=[a_spec, a_spec, w_spec, w_spec],
        out_specs=[o_spec, o_spec],
        out_shape=(
            jax.ShapeDtypeStruct((b, cout, mtot), jnp.float32),
            jax.ShapeDtypeStruct((b, cout, mtot), jnp.float32),
        ),
        compiler_params=pltpu.CompilerParams(
            dimension_semantics=("parallel", "parallel"),
            vmem_limit_bytes=vmem_limit),
    )(a_re, a_im, w_re, w_im)


# ---------------------------------------------------------------------------
# One-time weight preparation (outside the per-call forward): split complex
# weights into planar f32 (re, im) with the 4 corners folded on the lane axis
# and the lane axis pre-padded to the tiling used by the kernel.
# ---------------------------------------------------------------------------
def prepare_spectral_weights(w1, w2, w3, w4, lane_tile=512):
    cin, cout, m1, m2, m3 = w1.shape
    mtot, mtot_pad, _ = _mode_tiling(m1, m2, m3, lane_tile)
    w = jnp.stack([w1, w2, w3, w4], axis=2).reshape(cin, cout, mtot)
    w_re = jnp.real(w).astype(jnp.float32)
    w_im = jnp.imag(w).astype(jnp.float32)
    pad = mtot_pad - mtot
    if pad:
        w_re = jnp.pad(w_re, ((0, 0), (0, 0), (0, pad)))
        w_im = jnp.pad(w_im, ((0, 0), (0, 0), (0, pad)))
    return w_re, w_im


# ---------------------------------------------------------------------------
# Full SpectralConv3d forward (weights pre-split via prepare_spectral_weights)
# ---------------------------------------------------------------------------
@functools.partial(jax.jit,
                   static_argnames=("modes1", "modes2", "modes3", "lane_tile"))
def spectral_conv3d(x, w_re, w_im, *, modes1, modes2, modes3, lane_tile=512):
    B, Cin, X, Y, Z = x.shape
    Cout = w_re.shape[1]
    mtot, mtot_pad, tm = _mode_tiling(modes1, modes2, modes3, lane_tile)
    cout_tile = _choose_cout_tile(Cout, B, Cin, tm)

    # TODO(synk): rfftn/irfftn have no Pallas equivalent; they run as XLA FFT.
    x_ft = jnp.fft.rfftn(x, axes=(2, 3, 4))        # (B, Cin, X, Y, Z//2+1) c64
    z_dim = min(x_ft.shape[4], modes3)

    # TODO(synk): corner gather / transpose / planarize below is left to XLA
    # fusion; if profiling shows extra HBM passes, replace with a small Pallas
    # planarize pre-kernel (and the mirrored scatter on the output side).
    def corner(xs, ys):
        sl = x_ft[:, :, xs, ys, :z_dim]            # (B, Cin, m1, m2, z_dim)
        pad = modes3 - z_dim
        if pad > 0:
            sl = jnp.pad(sl, ((0, 0), (0, 0), (0, 0), (0, 0), (0, pad)))
        return sl

    c = jnp.stack([
        corner(slice(0, modes1), slice(0, modes2)),
        corner(slice(X - modes1, X), slice(0, modes2)),
        corner(slice(0, modes1), slice(Y - modes2, Y)),
        corner(slice(X - modes1, X), slice(Y - modes2, Y)),
    ], axis=2)                                     # (B, Cin, 4, m1, m2, m3) c64

    a = jnp.transpose(c.reshape(B, Cin, mtot), (1, 0, 2))     # (Cin, B, mtot)
    a_re = jnp.real(a).astype(jnp.float32)
    a_im = jnp.imag(a).astype(jnp.float32)
    if mtot_pad > mtot:
        pad = ((0, 0), (0, 0), (0, mtot_pad - mtot))
        a_re = jnp.pad(a_re, pad)
        a_im = jnp.pad(a_im, pad)

    out_re, out_im = _compl_mul_folded(a_re, a_im, w_re, w_im,
                                       m_tile=tm, cout_tile=cout_tile)
    out = (out_re[:, :, :mtot] + 1j * out_im[:, :, :mtot]).astype(jnp.complex64)
    out = out.reshape(B, Cout, 4, modes1, modes2, modes3)

    out_ft = jnp.zeros((B, Cout, X, Y, modes3), dtype=jnp.complex64)
    out_ft = out_ft.at[:, :, :modes1, :modes2, :].set(out[:, :, 0])
    out_ft = out_ft.at[:, :, X - modes1:, :modes2, :].set(out[:, :, 1])
    out_ft = out_ft.at[:, :, :modes1, Y - modes2:, :].set(out[:, :, 2])
    out_ft = out_ft.at[:, :, X - modes1:, Y - modes2:, :].set(out[:, :, 3])

    # irfftn with explicit output size s=(X, Y, Z), same as torch.fft.irfftn.
    return jnp.fft.irfftn(out_ft, s=(X, Y, Z), axes=(2, 3, 4))


# ---------------------------------------------------------------------------
# Pure-JAX reference (mirrors the PyTorch forward exactly) for validation.
# ---------------------------------------------------------------------------
def spectral_conv3d_ref(x, w1, w2, w3, w4, modes1, modes2, modes3):
    B, Cin, X, Y, Z = x.shape
    Cout = w1.shape[1]
    x_ft = jnp.fft.rfftn(x, axes=(2, 3, 4))
    z_dim = min(x_ft.shape[4], modes3)

    def mul(sl, w):
        coeff = jnp.zeros((B, Cin, modes1, modes2, modes3), jnp.complex64)
        coeff = coeff.at[..., :z_dim].set(sl)
        return jnp.einsum('bixyz,ioxyz->boxyz', coeff, w)

    out_ft = jnp.zeros((B, Cout, X, Y, modes3), jnp.complex64)
    out_ft = out_ft.at[:, :, :modes1, :modes2, :].set(
        mul(x_ft[:, :, :modes1, :modes2, :z_dim], w1))
    out_ft = out_ft.at[:, :, -modes1:, :modes2, :].set(
        mul(x_ft[:, :, -modes1:, :modes2, :z_dim], w2))
    out_ft = out_ft.at[:, :, :modes1, -modes2:, :].set(
        mul(x_ft[:, :, :modes1, -modes2:, :z_dim], w3))
    out_ft = out_ft.at[:, :, -modes1:, -modes2:, :].set(
        mul(x_ft[:, :, -modes1:, -modes2:, :z_dim], w4))
    return jnp.fft.irfftn(out_ft, s=(X, Y, Z), axes=(2, 3, 4))


if __name__ == "__main__":
    # Small shapes consistent with the module.
    B, Cin, Cout = 2, 4, 4
    X = Y = Z = 16
    modes1 = modes2 = modes3 = 4

    key = jax.random.PRNGKey(0)
    kx, k1r, k1i, k2r, k2i, k3r, k3i, k4r, k4i = jax.random.split(key, 9)

    x = jax.random.normal(kx, (B, Cin, X, Y, Z), dtype=jnp.float32)

    scale = 1.0 / (Cin * Cout)
    wshape = (Cin, Cout, modes1, modes2, modes3)

    def make_w(kr, ki):
        # torch.rand(..., dtype=cfloat): real & imag each uniform [0, 1)
        return (scale * (jax.random.uniform(kr, wshape)
                         + 1j * jax.random.uniform(ki, wshape))
                ).astype(jnp.complex64)

    w1 = make_w(k1r, k1i)
    w2 = make_w(k2r, k2i)
    w3 = make_w(k3r, k3i)
    w4 = make_w(k4r, k4i)

    # One-time weight preparation (persistent planar f32 re/im, corners folded).
    w_re, w_im = prepare_spectral_weights(w1, w2, w3, w4)
    w_re = jax.block_until_ready(w_re)
    w_im = jax.block_until_ready(w_im)

    out = spectral_conv3d(x, w_re, w_im,
                          modes1=modes1, modes2=modes2, modes3=modes3)
    out = jax.block_until_ready(out)

    ref = spectral_conv3d_ref(x, w1, w2, w3, w4, modes1, modes2, modes3)
    assert out.shape == (B, Cout, X, Y, Z), out.shape
    assert jnp.allclose(out, ref, atol=1e-4, rtol=1e-4), \
        float(jnp.max(jnp.abs(out - ref)))

    print("KERNEL_OK")
</pallas_src>

<mosaic_0001>
module attributes {stable_mosaic.version = 11 : i64} {
  func.func @_spectral_mul_kernel(%arg0: i32, %arg1: i32, %arg2: memref<4x2x256xf32, #tpu.memory_space<vmem>>, %arg3: memref<4x2x256xf32, #tpu.memory_space<vmem>>, %arg4: memref<4x4x256xf32, #tpu.memory_space<vmem>>, %arg5: memref<4x4x256xf32, #tpu.memory_space<vmem>>, %arg6: memref<2x4x256xf32, #tpu.memory_space<vmem>>, %arg7: memref<2x4x256xf32, #tpu.memory_space<vmem>>) attributes {dimension_semantics = [#tpu.dimension_semantics<parallel>, #tpu.dimension_semantics<parallel>], iteration_bounds = array<i64: 1, 1>, scalar_prefetch = 0 : i64, scratch_operands = 0 : i64, tpu.core_type = #tpu.core_type<tc>, window_params = [{transform_indices = @transform_0, window_bounds = array<i64: 4, 2, 256>}, {transform_indices = @transform_1, window_bounds = array<i64: 4, 2, 256>}, {transform_indices = @transform_2, window_bounds = array<i64: 4, 4, 256>}, {transform_indices = @transform_3, window_bounds = array<i64: 4, 4, 256>}, {transform_indices = @transform_4, window_bounds = array<i64: 2, 4, 256>}, {transform_indices = @transform_5, window_bounds = array<i64: 2, 4, 256>}]} {
    %cst = arith.constant 0.000000e+00 : f32
    %0 = vector.broadcast %cst : f32 to vector<2x4x256xf32>
    %c0_i32 = arith.constant 0 : i32
    %1 = arith.index_cast %c0_i32 : i32 to index
    %c0 = arith.constant 0 : index
    %c0_0 = arith.constant 0 : index
    %2 = vector.load %arg2[%1, %c0, %c0_0] : memref<4x2x256xf32, #tpu.memory_space<vmem>>, vector<1x2x256xf32>
    %3 = vector.shape_cast %2 : vector<1x2x256xf32> to vector<2x256xf32>
    %4 = arith.index_cast %c0_i32 : i32 to index
    %c0_1 = arith.constant 0 : index
    %c0_2 = arith.constant 0 : index
    %5 = vector.load %arg3[%4, %c0_1, %c0_2] : memref<4x2x256xf32, #tpu.memory_space<vmem>>, vector<1x2x256xf32>
    %6 = vector.shape_cast %5 : vector<1x2x256xf32> to vector<2x256xf32>
    %7 = arith.index_cast %c0_i32 : i32 to index
    %c0_3 = arith.constant 0 : index
    %c0_4 = arith.constant 0 : index
    %8 = vector.load %arg4[%7, %c0_3, %c0_4] : memref<4x4x256xf32, #tpu.memory_space<vmem>>, vector<1x4x256xf32>
    %9 = vector.shape_cast %8 : vector<1x4x256xf32> to vector<4x256xf32>
    %10 = arith.index_cast %c0_i32 : i32 to index
    %c0_5 = arith.constant 0 : index
    %c0_6 = arith.constant 0 : index
    %11 = vector.load %arg5[%10, %c0_5, %c0_6] : memref<4x4x256xf32, #tpu.memory_space<vmem>>, vector<1x4x256xf32>
    %12 = vector.shape_cast %11 : vector<1x4x256xf32> to vector<4x256xf32>
    %13 = vector.shape_cast %3 : vector<2x256xf32> to vector<2x1x256xf32>
    %14 = vector.shape_cast %9 : vector<4x256xf32> to vector<1x4x256xf32>
    %15 = vector.broadcast %13 : vector<2x1x256xf32> to vector<2x4x256xf32>
    %16 = vector.broadcast %14 : vector<1x4x256xf32> to vector<2x4x256xf32>
    %17 = arith.mulf %15, %16 : vector<2x4x256xf32>
    %18 = arith.addf %0, %17 : vector<2x4x256xf32>
    %19 = vector.shape_cast %6 : vector<2x256xf32> to vector<2x1x256xf32>
    %20 = vector.shape_cast %12 : vector<4x256xf32> to vector<1x4x256xf32>
    %21 = vector.broadcast %19 : vector<2x1x256xf32> to vector<2x4x256xf32>
    %22 = vector.broadcast %20 : vector<1x4x256xf32> to vector<2x4x256xf32>
    %23 = arith.mulf %21, %22 : vector<2x4x256xf32>
    %24 = arith.addf %0, %23 : vector<2x4x256xf32>
    %25 = arith.addf %3, %6 : vector<2x256xf32>
    %26 = vector.shape_cast %25 : vector<2x256xf32> to vector<2x1x256xf32>
    %27 = arith.addf %9, %12 : vector<4x256xf32>
    %28 = vector.shape_cast %27 : vector<4x256xf32> to vector<1x4x256xf32>
    %29 = vector.broadcast %26 : vector<2x1x256xf32> to vector<2x4x256xf32>
    %30 = vector.broadcast %28 : vector<1x4x256xf32> to vector<2x4x256xf32>
    %31 = arith.mulf %29, %30 : vector<2x4x256xf32>
    %32 = arith.addf %0, %31 : vector<2x4x256xf32>
    %c1_i32 = arith.constant 1 : i32
    %33 = arith.index_cast %c1_i32 : i32 to index
    %c0_7 = arith.constant 0 : index
    %c0_8 = arith.constant 0 : index
    %34 = vector.load %arg2[%33, %c0_7, %c0_8] : memref<4x2x256xf32, #tpu.memory_space<vmem>>, vector<1x2x256xf32>
    %35 = vector.shape_cast %34 : vector<1x2x256xf32> to vector<2x256xf32>
    %36 = arith.index_cast %c1_i32 : i32 to index
    %c0_9 = arith.constant 0 : index
    %c0_10 = arith.constant 0 : index
    %37 = vector.load %arg3[%36, %c0_9, %c0_10] : memref<4x2x256xf32, #tpu.memory_space<vmem>>, vector<1x2x256xf32>
    %38 = vector.shape_cast %37 : vector<1x2x256xf32> to vector<2x256xf32>
    %39 = arith.index_cast %c1_i32 : i32 to index
    %c0_11 = arith.constant 0 : index
    %c0_12 = arith.constant 0 : index
    %40 = vector.load %arg4[%39, %c0_11, %c0_12] : memref<4x4x256xf32, #tpu.memory_space<vmem>>, vector<1x4x256xf32>
    %41 = vector.shape_cast %40 : vector<1x4x256xf32> to vector<4x256xf32>
    %42 = arith.index_cast %c1_i32 : i32 to index
    %c0_13 = arith.constant 0 : index
    %c0_14 = arith.constant 0 : index
    %43 = vector.load %arg5[%42, %c0_13, %c0_14] : memref<4x4x256xf32, #tpu.memory_space<vmem>>, vector<1x4x256xf32>
    %44 = vector.shape_cast %43 : vector<1x4x256xf32> to vector<4x256xf32>
    %45 = vector.shape_cast %35 : vector<2x256xf32> to vector<2x1x256xf32>
    %46 = vector.shape_cast %41 : vector<4x256xf32> to vector<1x4x256xf32>
    %47 = vector.broadcast %45 : vector<2x1x256xf32> to vector<2x4x256xf32>
    %48 = vector.broadcast %46 : vector<1x4x256xf32> to vector<2x4x256xf32>
    %49 = arith.mulf %47, %48 : vector<2x4x256xf32>
    %50 = arith.addf %18, %49 : vector<2x4x256xf32>
    %51 = vector.shape_cast %38 : vector<2x256xf32> to vector<2x1x256xf32>
    %52 = vector.shape_cast %44 : vector<4x256xf32> to vector<1x4x256xf32>
    %53 = vector.broadcast %51 : vector<2x1x256xf32> to vector<2x4x256xf32>
    %54 = vector.broadcast %52 : vector<1x4x256xf32> to vector<2x4x256xf32>
    %55 = arith.mulf %53, %54 : vector<2x4x256xf32>
    %56 = arith.addf %24, %55 : vector<2x4x256xf32>
    %57 = arith.addf %35, %38 : vector<2x256xf32>
    %58 = vector.shape_cast %57 : vector<2x256xf32> to vector<2x1x256xf32>
    %59 = arith.addf %41, %44 : vector<4x256xf32>
    %60 = vector.shape_cast %59 : vector<4x256xf32> to vector<1x4x256xf32>
    %61 = vector.broadcast %58 : vector<2x1x256xf32> to vector<2x4x256xf32>
    %62 = vector.broadcast %60 : vector<1x4x256xf32> to vector<2x4x256xf32>
    %63 = arith.mulf %61, %62 : vector<2x4x256xf32>
    %64 = arith.addf %32, %63 : vector<2x4x256xf32>
    %c2_i32 = arith.constant 2 : i32
    %65 = arith.index_cast %c2_i32 : i32 to index
    %c0_15 = arith.constant 0 : index
    %c0_16 = arith.constant 0 : index
    %66 = vector.load %arg2[%65, %c0_15, %c0_16] : memref<4x2x256xf32, #tpu.memory_space<vmem>>, vector<1x2x256xf32>
    %67 = vector.shape_cast %66 : vector<1x2x256xf32> to vector<2x256xf32>
    %68 = arith.index_cast %c2_i32 : i32 to index
    %c0_17 = arith.constant 0 : index
    %c0_18 = arith.constant 0 : index
    %69 = vector.load %arg3[%68, %c0_17, %c0_18] : memref<4x2x256xf32, #tpu.memory_space<vmem>>, vector<1x2x256xf32>
    %70 = vector.shape_cast %69 : vector<1x2x256xf32> to vector<2x256xf32>
    %71 = arith.index_cast %c2_i32 : i32 to index
    %c0_19 = arith.constant 0 : index
    %c0_20 = arith.constant 0 : index
    %72 = vector.load %arg4[%71, %c0_19, %c0_20] : memref<4x4x256xf32, #tpu.memory_space<vmem>>, vector<1x4x256xf32>
    %73 = vector.shape_cast %72 : vector<1x4x256xf32> to vector<4x256xf32>
    %74 = arith.index_cast %c2_i32 : i32 to index
    %c0_21 = arith.constant 0 : index
    %c0_22 = arith.constant 0 : index
    %75 = vector.load %arg5[%74, %c0_21, %c0_22] : memref<4x4x256xf32, #tpu.memory_space<vmem>>, vector<1x4x256xf32>
    %76 = vector.shape_cast %75 : vector<1x4x256xf32> to vector<4x256xf32>
    %77 = vector.shape_cast %67 : vector<2x256xf32> to vector<2x1x256xf32>
    %78 = vector.shape_cast %73 : vector<4x256xf32> to vector<1x4x256xf32>
    %79 = vector.broadcast %77 : vector<2x1x256xf32> to vector<2x4x256xf32>
    %80 = vector.broadcast %78 : vector<1x4x256xf32> to vector<2x4x256xf32>
    %81 = arith.mulf %79, %80 : vector<2x4x256xf32>
    %82 = arith.addf %50, %81 : vector<2x4x256xf32>
    %83 = vector.shape_cast %70 : vector<2x256xf32> to vector<2x1x256xf32>
    %84 = vector.shape_cast %76 : vector<4x256xf32> to vector<1x4x256xf32>
    %85 = vector.broadcast %83 : vector<2x1x256xf32> to vector<2x4x256xf32>
    %86 = vector.broadcast %84 : vector<1x4x256xf32> to vector<2x4x256xf32>
    %87 = arith.mulf %85, %86 : vector<2x4x256xf32>
    %88 = arith.addf %56, %87 : vector<2x4x256xf32>
    %89 = arith.addf %67, %70 : vector<2x256xf32>
    %90 = vector.shape_cast %89 : vector<2x256xf32> to vector<2x1x256xf32>
    %91 = arith.addf %73, %76 : vector<4x256xf32>
    %92 = vector.shape_cast %91 : vector<4x256xf32> to vector<1x4x256xf32>
    %93 = vector.broadcast %90 : vector<2x1x256xf32> to vector<2x4x256xf32>
    %94 = vector.broadcast %92 : vector<1x4x256xf32> to vector<2x4x256xf32>
    %95 = arith.mulf %93, %94 : vector<2x4x256xf32>
    %96 = arith.addf %64, %95 : vector<2x4x256xf32>
    %c3_i32 = arith.constant 3 : i32
    %97 = arith.index_cast %c3_i32 : i32 to index
    %c0_23 = arith.constant 0 : index
    %c0_24 = arith.constant 0 : index
    %98 = vector.load %arg2[%97, %c0_23, %c0_24] : memref<4x2x256xf32, #tpu.memory_space<vmem>>, vector<1x2x256xf32>
    %99 = vector.shape_cast %98 : vector<1x2x256xf32> to vector<2x256xf32>
    %100 = arith.index_cast %c3_i32 : i32 to index
    %c0_25 = arith.constant 0 : index
    %c0_26 = arith.constant 0 : index
    %101 = vector.load %arg3[%100, %c0_25, %c0_26] : memref<4x2x256xf32, #tpu.memory_space<vmem>>, vector<1x2x256xf32>
    %102 = vector.shape_cast %101 : vector<1x2x256xf32> to vector<2x256xf32>
    %103 = arith.index_cast %c3_i32 : i32 to index
    %c0_27 = arith.constant 0 : index
    %c0_28 = arith.constant 0 : index
    %104 = vector.load %arg4[%103, %c0_27, %c0_28] : memref<4x4x256xf32, #tpu.memory_space<vmem>>, vector<1x4x256xf32>
    %105 = vector.shape_cast %104 : vector<1x4x256xf32> to vector<4x256xf32>
    %106 = arith.index_cast %c3_i32 : i32 to index
    %c0_29 = arith.constant 0 : index
    %c0_30 = arith.constant 0 : index
    %107 = vector.load %arg5[%106, %c0_29, %c0_30] : memref<4x4x256xf32, #tpu.memory_space<vmem>>, vector<1x4x256xf32>
    %108 = vector.shape_cast %107 : vector<1x4x256xf32> to vector<4x256xf32>
    %109 = vector.shape_cast %99 : vector<2x256xf32> to vector<2x1x256xf32>
    %110 = vector.shape_cast %105 : vector<4x256xf32> to vector<1x4x256xf32>
    %111 = vector.broadcast %109 : vector<2x1x256xf32> to vector<2x4x256xf32>
    %112 = vector.broadcast %110 : vector<1x4x256xf32> to vector<2x4x256xf32>
    %113 = arith.mulf %111, %112 : vector<2x4x256xf32>
    %114 = arith.addf %82, %113 : vector<2x4x256xf32>
    %115 = vector.shape_cast %102 : vector<2x256xf32> to vector<2x1x256xf32>
    %116 = vector.shape_cast %108 : vector<4x256xf32> to vector<1x4x256xf32>
    %117 = vector.broadcast %115 : vector<2x1x256xf32> to vector<2x4x256xf32>
    %118 = vector.broadcast %116 : vector<1x4x256xf32> to vector<2x4x256xf32>
    %119 = arith.mulf %117, %118 : vector<2x4x256xf32>
    %120 = arith.addf %88, %119 : vector<2x4x256xf32>
    %121 = arith.addf %99, %102 : vector<2x256xf32>
    %122 = vector.shape_cast %121 : vector<2x256xf32> to vector<2x1x256xf32>
    %123 = arith.addf %105, %108 : vector<4x256xf32>
    %124 = vector.shape_cast %123 : vector<4x256xf32> to vector<1x4x256xf32>
    %125 = vector.broadcast %122 : vector<2x1x256xf32> to vector<2x4x256xf32>
    %126 = vector.broadcast %124 : vector<1x4x256xf32> to vector<2x4x256xf32>
    %127 = arith.mulf %125, %126 : vector<2x4x256xf32>
    %128 = arith.addf %96, %127 : vector<2x4x256xf32>
    %c4_i32 = arith.constant 4 : i32
    %129 = arith.subf %114, %120 : vector<2x4x256xf32>
    %c0_31 = arith.constant 0 : index
    %c0_32 = arith.constant 0 : index
    %c0_33 = arith.constant 0 : index
    %130 = vector.load %arg6[%c0_31, %c0_32, %c0_33] : memref<2x4x256xf32, #tpu.memory_space<vmem>>, vector<2x4x256xf32>
    tpu.vector_store %arg6[%c0_31, %c0_32, %c0_33], %129 {strides = array<i32>} : memref<2x4x256xf32, #tpu.memory_space<vmem>>, vector<2x4x256xf32>,
    %131 = arith.subf %128, %114 : vector<2x4x256xf32>
    %132 = arith.subf %131, %120 : vector<2x4x256xf32>
    %c0_34 = arith.constant 0 : index
    %c0_35 = arith.constant 0 : index
    %c0_36 = arith.constant 0 : index
    %133 = vector.load %arg7[%c0_34, %c0_35, %c0_36] : memref<2x4x256xf32, #tpu.memory_space<vmem>>, vector<2x4x256xf32>
    tpu.vector_store %arg7[%c0_34, %c0_35, %c0_36], %132 {strides = array<i32>} : memref<2x4x256xf32, #tpu.memory_space<vmem>>, vector<2x4x256xf32>,
    return
  }
  func.func @transform_0(%arg0: i32, %arg1: i32) -> (i32, i32, i32) {
    %c0_i32 = arith.constant 0 : i32
    %c0_i32_0 = arith.constant 0 : i32
    %c0_i32_1 = arith.constant 0 : i32
    return %c0_i32, %c0_i32_0, %arg0 : i32, i32, i32
  }
  func.func @transform_1(%arg0: i32, %arg1: i32) -> (i32, i32, i32) {
    %c0_i32 = arith.constant 0 : i32
    %c0_i32_0 = arith.constant 0 : i32
    %c0_i32_1 = arith.constant 0 : i32
    return %c0_i32, %c0_i32_0, %arg0 : i32, i32, i32
  }
  func.func @transform_2(%arg0: i32, %arg1: i32) -> (i32, i32, i32) {
    %c0_i32 = arith.constant 0 : i32
    %c0_i32_0 = arith.constant 0 : i32
    return %c0_i32, %arg1, %arg0 : i32, i32, i32
  }
  func.func @transform_3(%arg0: i32, %arg1: i32) -> (i32, i32, i32) {
    %c0_i32 = arith.constant 0 : i32
    %c0_i32_0 = arith.constant 0 : i32
    return %c0_i32, %arg1, %arg0 : i32, i32, i32
  }
  func.func @transform_4(%arg0: i32, %arg1: i32) -> (i32, i32, i32) {
    %c0_i32 = arith.constant 0 : i32
    %c0_i32_0 = arith.constant 0 : i32
    return %c0_i32, %arg1, %arg0 : i32, i32, i32
  }
  func.func @transform_5(%arg0: i32, %arg1: i32) -> (i32, i32, i32) {
    %c0_i32 = arith.constant 0 : i32
    %c0_i32_0 = arith.constant 0 : i32
    return %c0_i32, %arg1, %arg0 : i32, i32, i32
  }
}

</mosaic_0001>

<llo_original>
// kernel: spectral_conv3d.1
$region0: #{spectral_conv3d.1}
  #allocation0 [shape = 'u32[]', space=smem, size = 0x4, offset = 0x4, fixed_abs, tag = 'smem constant byte address 0x4 - core index']
  #allocation1 [shape = 'u32[144,128]{1,0:T(1,128)}', space=vmem, size = 0x12000, scoped, tag = 'internal scratch']
  %s0 = inlined_call_operand.vmem [shape: f32[4,2,256], index: 0, kind: input, shape index: {}]
  %s1 = inlined_call_operand.vmem [shape: f32[4,2,256], index: 1, kind: input, shape index: {}]
  %s2 = inlined_call_operand.vmem [shape: f32[4,4,256], index: 2, kind: input, shape index: {}]
  %s3 = inlined_call_operand.vmem [shape: f32[4,4,256], index: 3, kind: input, shape index: {}]
  %s4 = inlined_call_operand.vmem [shape: f32[2,4,256], index: 4, kind: output, shape index: {0}]
  %s5 = inlined_call_operand.vmem [shape: f32[2,4,256], index: 5, kind: output, shape index: {1}]
  %6 = xla_tuple %s4, %s5
  %s7 = sld [smem:[#allocation0]]
  $region34: #{spectral_conv3d.1} parent=0
    _
  %s9 = ssub.s32 1, %s7
  %s10 = scalar_select 0, %s9, %s7
  // Predicated region
  $region2: #{spectral_conv3d.1} parent=0 // pred_check
    _
  $region3: #{spectral_conv3d.1} parent=0 // pred_check_branch
    %12 = sbr.rel (0) target = $region5
  $region4: #{spectral_conv3d.1} parent=0 // pred_region
    _
  $region5: #{spectral_conv3d.1} parent=0 // pred_fallthru
    _
  // Predicated region
  $region6: #{spectral_conv3d.1} parent=0 // pred_check
    _
  $region7: #{spectral_conv3d.1} parent=0 // pred_check_branch
    %14 = sbr.rel (0) target = $region9
  $region8: #{spectral_conv3d.1} parent=0 // pred_region
    _
  $region9: #{spectral_conv3d.1} parent=0 // pred_fallthru
    _
  // Predicated region
  $region10: #{spectral_conv3d.1} parent=0 // pred_check
    _
  $region11: #{spectral_conv3d.1} parent=0 // pred_check_branch
    %16 = sbr.rel (0) target = $region13
  $region12: #{spectral_conv3d.1} parent=0 // pred_region
    _
  $region13: #{spectral_conv3d.1} parent=0 // pred_fallthru
    _
  // Predicated region
  $region14: #{spectral_conv3d.1} parent=0 // pred_check
    _
  $region15: #{spectral_conv3d.1} parent=0 // pred_check_branch
    %18 = sbr.rel (0) target = $region17
  $region16: #{spectral_conv3d.1} parent=0 // pred_region
    _
  $region17: #{spectral_conv3d.1} parent=0 // pred_fallthru
    _
  %v19 = vld [vmem:[%s0] sm:$0xf]
  %v20 = vld [vmem:[%s1] sm:$0xf]
  %v21 = vld [vmem:[%s2] sm:$0xff]
  %v22 = vld [vmem:[%s3] sm:$0xff]
  %v25 = vunpack.c.l.s4 1966171168
  %v26 = vunpack.c.0.s8 %v25
  %v27 = vlaneseq
  %v28 = vshrl.u32 %v27, 7
  %v29 = vsub.s32 %v26, %v28
  %v30 = vrot.slane %v19, %v29
  %v31 = vcombine.high %v30, %v30
  %v32 = vlaneseq
  %v33 = vshrl.u32 %v32, 7
  %v34 = vsub.s32 0, %v33
  %v35 = vrot.slane %v30, %v34
  %v36 = vlaneseq
  %v37 = vshrl.u32 %v36, 7
  %v38 = vsub.s32 1, %v37
  %v39 = vrot.slane %v30, %v38
  %v40 = vlaneseq
  %v41 = vshrl.u32 %v40, 7
  %v42 = vsub.s32 0, %v41
  %v43 = vrot.slane %v31, %v42
  %v44 = vlaneseq
  %v45 = vshrl.u32 %v44, 7
  %v46 = vsub.s32 1, %v45
  %v47 = vrot.slane %v31, %v46
  %v53 = vcombine.high %v21, %v21
  %v55 = vmul.f32 %v35, %v21
  %v56 = vmul.f32 %v39, %v53
  %v57 = vmul.f32 %v43, %v21
  %v58 = vmul.f32 %v47, %v53
  %v59 = vadd.f32 %v55, 0.0
  %v60 = vadd.f32 %v56, 0.0
  %v61 = vadd.f32 %v57, 0.0
  %v62 = vadd.f32 %v58, 0.0
  %v65 = vunpack.c.l.s4 1966171168
  %v66 = vunpack.c.0.s8 %v65
  %v67 = vlaneseq
  %v68 = vshrl.u32 %v67, 7
  %v69 = vsub.s32 %v66, %v68
  %v70 = vrot.slane %v20, %v69
  %v71 = vcombine.high %v70, %v70
  %v72 = vlaneseq
  %v73 = vshrl.u32 %v72, 7
  %v74 = vsub.s32 0, %v73
  %v75 = vrot.slane %v70, %v74
  %v76 = vlaneseq
  %v77 = vshrl.u32 %v76, 7
  %v78 = vsub.s32 1, %v77
  %v79 = vrot.slane %v70, %v78
  %v80 = vlaneseq
  %v81 = vshrl.u32 %v80, 7
  %v82 = vsub.s32 0, %v81
  %v83 = vrot.slane %v71, %v82
  %v84 = vlaneseq
  %v85 = vshrl.u32 %v84, 7
  %v86 = vsub.s32 1, %v85
  %v87 = vrot.slane %v71, %v86
  %v93 = vcombine.high %v22, %v22
  %v95 = vmul.f32 %v75, %v22
  %v96 = vmul.f32 %v79, %v93
  %v97 = vmul.f32 %v83, %v22
  %v98 = vmul.f32 %v87, %v93
  %v99 = vadd.f32 %v95, 0.0
  %v100 = vadd.f32 %v96, 0.0
  %v101 = vadd.f32 %v97, 0.0
  %v102 = vadd.f32 %v98, 0.0
  %v103 = vadd.f32 %v19, %v20
  %v106 = vunpack.c.l.s4 1966171168
  %v107 = vunpack.c.0.s8 %v106
  %v108 = vlaneseq
  %v109 = vshrl.u32 %v108, 7
  %v110 = vsub.s32 %v107, %v109
  %v111 = vrot.slane %v103, %v110
  %v112 = vcombine.high %v111, %v111
  %v113 = vadd.f32 %v21, %v22
  %v114 = vlaneseq
  %v115 = vshrl.u32 %v114, 7
  %v116 = vsub.s32 0, %v115
  %v117 = vrot.slane %v111, %v116
  %v118 = vlaneseq
  %v119 = vshrl.u32 %v118, 7
  %v120 = vsub.s32 1, %v119
  %v121 = vrot.slane %v111, %v120
  %v122 = vlaneseq
  %v123 = vshrl.u32 %v122, 7
  %v124 = vsub.s32 0, %v123
  %v125 = vrot.slane %v112, %v124
  %v126 = vlaneseq
  %v127 = vshrl.u32 %v126, 7
  %v128 = vsub.s32 1, %v127
  %v129 = vrot.slane %v112, %v128
  %v135 = vcombine.high %v113, %v113
  %v137 = vmul.f32 %v117, %v113
  %v138 = vmul.f32 %v121, %v135
  %v139 = vmul.f32 %v125, %v113
  %v140 = vmul.f32 %v129, %v135
  %v141 = vadd.f32 %v137, 0.0
  %v142 = vadd.f32 %v138, 0.0
  %v143 = vadd.f32 %v139, 0.0
  %v144 = vadd.f32 %v140, 0.0
  %s145 = scalar_lea.vmem %s0, 4
  %v146 = vld [vmem:[%s145] sm:$0xf]
  %s147 = scalar_lea.vmem %s1, 4
  %v148 = vld [vmem:[%s147] sm:$0xf]
  %s149 = scalar_lea.vmem %s2, 8
  %v150 = vld [vmem:[%s149] sm:$0xff]
  %s151 = scalar_lea.vmem %s3, 8
  %v152 = vld [vmem:[%s151] sm:$0xff]
  %v155 = vunpack.c.l.s4 1966171168
  %v156 = vunpack.c.0.s8 %v155
  %v157 = vlaneseq
  %v158 = vshrl.u32 %v157, 7
  %v159 = vsub.s32 %v156, %v158
  %v160 = vrot.slane %v146, %v159
  %v161 = vcombine.high %v160, %v160
  %v162 = vlaneseq
  %v163 = vshrl.u32 %v162, 7
  %v164 = vsub.s32 0, %v163
  %v165 = vrot.slane %v160, %v164
  %v166 = vlaneseq
  %v167 = vshrl.u32 %v166, 7
  %v168 = vsub.s32 1, %v167
  %v169 = vrot.slane %v160, %v168
  %v170 = vlaneseq
  %v171 = vshrl.u32 %v170, 7
  %v172 = vsub.s32 0, %v171
  %v173 = vrot.slane %v161, %v172
  %v174 = vlaneseq
  %v175 = vshrl.u32 %v174, 7
  %v176 = vsub.s32 1, %v175
  %v177 = vrot.slane %v161, %v176
  %v183 = vcombine.high %v150, %v150
  %v185 = vmul.f32 %v165, %v150
  %v186 = vmul.f32 %v169, %v183
  %v187 = vmul.f32 %v173, %v150
  %v188 = vmul.f32 %v177, %v183
  %v189 = vadd.f32 %v59, %v185
  %v190 = vadd.f32 %v60, %v186
  %v191 = vadd.f32 %v61, %v187
  %v192 = vadd.f32 %v62, %v188
  %v195 = vunpack.c.l.s4 1966171168
  %v196 = vunpack.c.0.s8 %v195
  %v197 = vlaneseq
  %v198 = vshrl.u32 %v197, 7
  %v199 = vsub.s32 %v196, %v198
  %v200 = vrot.slane %v148, %v199
  %v201 = vcombine.high %v200, %v200
  %v202 = vlaneseq
  %v203 = vshrl.u32 %v202, 7
  %v204 = vsub.s32 0, %v203
  %v205 = vrot.slane %v200, %v204
  %v206 = vlaneseq
  %v207 = vshrl.u32 %v206, 7
  %v208 = vsub.s32 1, %v207
  %v209 = vrot.slane %v200, %v208
  %v210 = vlaneseq
  %v211 = vshrl.u32 %v210, 7
  %v212 = vsub.s32 0, %v211
  %v213 = vrot.slane %v201, %v212
  %v214 = vlaneseq
  %v215 = vshrl.u32 %v214, 7
  %v216 = vsub.s32 1, %v215
  %v217 = vrot.slane %v201, %v216
  %v223 = vcombine.high %v152, %v152
  %v225 = vmul.f32 %v205, %v152
  %v226 = vmul.f32 %v209, %v223
  %v227 = vmul.f32 %v213, %v152
  %v228 = vmul.f32 %v217, %v223
  %v229 = vadd.f32 %v99, %v225
  %v230 = vadd.f32 %v100, %v226
  %v231 = vadd.f32 %v101, %v227
  %v232 = vadd.f32 %v102, %v228
  %v233 = vadd.f32 %v146, %v148
  %v236 = vunpack.c.l.s4 1966171168
  %v237 = vunpack.c.0.s8 %v236
  %v238 = vlaneseq
  %v239 = vshrl.u32 %v238, 7
  %v240 = vsub.s32 %v237, %v239
  %v241 = vrot.slane %v233, %v240
  %v242 = vcombine.high %v241, %v241
  %v243 = vadd.f32 %v150, %v152
  %v244 = vlaneseq
  %v245 = vshrl.u32 %v244, 7
  %v246 = vsub.s32 0, %v245
  %v247 = vrot.slane %v241, %v246
  %v248 = vlaneseq
  %v249 = vshrl.u32 %v248, 7
  %v250 = vsub.s32 1, %v249
  %v251 = vrot.slane %v241, %v250
  %v252 = vlaneseq
  %v253 = vshrl.u32 %v252, 7
  %v254 = vsub.s32 0, %v253
  %v255 = vrot.slane %v242, %v254
  %v256 = vlaneseq
  %v257 = vshrl.u32 %v256, 7
  %v258 = vsub.s32 1, %v257
  %v259 = vrot.slane %v242, %v258
  %v265 = vcombine.high %v243, %v243
  %v267 = vmul.f32 %v247, %v243
  %v268 = vmul.f32 %v251, %v265
  %v269 = vmul.f32 %v255, %v243
  %v270 = vmul.f32 %v259, %v265
  %v271 = vadd.f32 %v141, %v267
  %v272 = vadd.f32 %v142, %v268
  %v273 = vadd.f32 %v143, %v269
  %v274 = vadd.f32 %v144, %v270
  %s275 = scalar_lea.vmem %s0, 8
  %v276 = vld [vmem:[%s275] sm:$0xf]
  %s277 = scalar_lea.vmem %s1, 8
  %v278 = vld [vmem:[%s277] sm:$0xf]
  %s279 = scalar_lea.vmem %s2, 16
  %v280 = vld [vmem:[%s279] sm:$0xff]
  %s281 = scalar_lea.vmem %s3, 16
  %v282 = vld [vmem:[%s281] sm:$0xff]
  %v285 = vunpack.c.l.s4 1966171168
  %v286 = vunpack.c.0.s8 %v285
  %v287 = vlaneseq
  %v288 = vshrl.u32 %v287, 7
  %v289 = vsub.s32 %v286, %v288
  %v290 = vrot.slane %v276, %v289
  %v291 = vcombine.high %v290, %v290
  %v292 = vlaneseq
  %v293 = vshrl.u32 %v292, 7
  %v294 = vsub.s32 0, %v293
  %v295 = vrot.slane %v290, %v294
  %v296 = vlaneseq
  %v297 = vshrl.u32 %v296, 7
  %v298 = vsub.s32 1, %v297
  %v299 = vrot.slane %v290, %v298
  %v300 = vlaneseq
  %v301 = vshrl.u32 %v300, 7
  %v302 = vsub.s32 0, %v301
  %v303 = vrot.slane %v291, %v302
  %v304 = vlaneseq
  %v305 = vshrl.u32 %v304, 7
  %v306 = vsub.s32 1, %v305
  %v307 = vrot.slane %v291, %v306
  %v313 = vcombine.high %v280, %v280
  %v315 = vmul.f32 %v295, %v280
  %v316 = vmul.f32 %v299, %v313
  %v317 = vmul.f32 %v303, %v280
  %v318 = vmul.f32 %v307, %v313
  %v319 = vadd.f32 %v189, %v315
  %v320 = vadd.f32 %v190, %v316
  %v321 = vadd.f32 %v191, %v317
  %v322 = vadd.f32 %v192, %v318
  %v325 = vunpack.c.l.s4 1966171168
  %v326 = vunpack.c.0.s8 %v325
  %v327 = vlaneseq
  %v328 = vshrl.u32 %v327, 7
  %v329 = vsub.s32 %v326, %v328
  %v330 = vrot.slane %v278, %v329
  %v331 = vcombine.high %v330, %v330
  %v332 = vlaneseq
  %v333 = vshrl.u32 %v332, 7
  %v334 = vsub.s32 0, %v333
  %v335 = vrot.slane %v330, %v334
  %v336 = vlaneseq
  %v337 = vshrl.u32 %v336, 7
  %v338 = vsub.s32 1, %v337
  %v339 = vrot.slane %v330, %v338
  %v340 = vlaneseq
  %v341 = vshrl.u32 %v340, 7
  %v342 = vsub.s32 0, %v341
  %v343 = vrot.slane %v331, %v342
  %v344 = vlaneseq
  %v345 = vshrl.u32 %v344, 7
  %v346 = vsub.s32 1, %v345
  %v347 = vrot.slane %v331, %v346
  %v353 = vcombine.high %v282, %v282
  %v355 = vmul.f32 %v335, %v282
  %v356 = vmul.f32 %v339, %v353
  %v357 = vmul.f32 %v343, %v282
  %v358 = vmul.f32 %v347, %v353
  %v359 = vadd.f32 %v229, %v355
  %v360 = vadd.f32 %v230, %v356
  %v361 = vadd.f32 %v231, %v357
  %v362 = vadd.f32 %v232, %v358
  %v363 = vadd.f32 %v276, %v278
  %v366 = vunpack.c.l.s4 1966171168
  %v367 = vunpack.c.0.s8 %v366
  %v368 = vlaneseq
  %v369 = vshrl.u32 %v368, 7
  %v370 = vsub.s32 %v367, %v369
  %v371 = vrot.slane %v363, %v370
  %v372 = vcombine.high %v371, %v371
  %v373 = vadd.f32 %v280, %v282
  %v374 = vlaneseq
  %v375 = vshrl.u32 %v374, 7
  %v376 = vsub.s32 0, %v375
  %v377 = vrot.slane %v371, %v376
  %v378 = vlaneseq
  %v379 = vshrl.u32 %v378, 7
  %v380 = vsub.s32 1, %v379
  %v381 = vrot.slane %v371, %v380
  %v382 = vlaneseq
  %v383 = vshrl.u32 %v382, 7
  %v384 = vsub.s32 0, %v383
  %v385 = vrot.slane %v372, %v384
  %v386 = vlaneseq
  %v387 = vshrl.u32 %v386, 7
  %v388 = vsub.s32 1, %v387
  %v389 = vrot.slane %v372, %v388
  %v395 = vcombine.high %v373, %v373
  %v397 = vmul.f32 %v377, %v373
  %v398 = vmul.f32 %v381, %v395
  %v399 = vmul.f32 %v385, %v373
  %v400 = vmul.f32 %v389, %v395
  %v401 = vadd.f32 %v271, %v397
  %v402 = vadd.f32 %v272, %v398
  %v403 = vadd.f32 %v273, %v399
  %v404 = vadd.f32 %v274, %v400
  %s405 = scalar_lea.vmem %s0, 12
  %v406 = vld [vmem:[%s405] sm:$0xf]
  %s407 = scalar_lea.vmem %s1, 12
  %v408 = vld [vmem:[%s407] sm:$0xf]
  %s409 = scalar_lea.vmem %s2, 24
  %v410 = vld [vmem:[%s409] sm:$0xff]
  %s411 = scalar_lea.vmem %s3, 24
  %v412 = vld [vmem:[%s411] sm:$0xff]
  %v415 = vunpack.c.l.s4 1966171168
  %v416 = vunpack.c.0.s8 %v415
  %v417 = vlaneseq
  %v418 = vshrl.u32 %v417, 7
  %v419 = vsub.s32 %v416, %v418
  %v420 = vrot.slane %v406, %v419
  %v421 = vcombine.high %v420, %v420
  %v422 = vlaneseq
  %v423 = vshrl.u32 %v422, 7
  %v424 = vsub.s32 0, %v423
  %v425 = vrot.slane %v420, %v424
  %v426 = vlaneseq
  %v427 = vshrl.u32 %v426, 7
  %v428 = vsub.s32 1, %v427
  %v429 = vrot.slane %v420, %v428
  %v430 = vlaneseq
  %v431 = vshrl.u32 %v430, 7
  %v432 = vsub.s32 0, %v431
  %v433 = vrot.slane %v421, %v432
  %v434 = vlaneseq
  %v435 = vshrl.u32 %v434, 7
  %v436 = vsub.s32 1, %v435
  %v437 = vrot.slane %v421, %v436
  %v443 = vcombine.high %v410, %v410
  %v445 = vmul.f32 %v425, %v410
  %v446 = vmul.f32 %v429, %v443
  %v447 = vmul.f32 %v433, %v410
  %v448 = vmul.f32 %v437, %v443
  %v449 = vadd.f32 %v319, %v445
  %v450 = vadd.f32 %v320, %v446
  %v451 = vadd.f32 %v321, %v447
  %v452 = vadd.f32 %v322, %v448
  %v455 = vunpack.c.l.s4 1966171168
  %v456 = vunpack.c.0.s8 %v455
  %v457 = vlaneseq
  %v458 = vshrl.u32 %v457, 7
  %v459 = vsub.s32 %v456, %v458
  %v460 = vrot.slane %v408, %v459
  %v461 = vcombine.high %v460, %v460
  %v462 = vlaneseq
  %v463 = vshrl.u32 %v462, 7
  %v464 = vsub.s32 0, %v463
  %v465 = vrot.slane %v460, %v464
  %v466 = vlaneseq
  %v467 = vshrl.u32 %v466, 7
  %v468 = vsub.s32 1, %v467
  %v469 = vrot.slane %v460, %v468
  %v470 = vlaneseq
  %v471 = vshrl.u32 %v470, 7
  %v472 = vsub.s32 0, %v471
  %v473 = vrot.slane %v461, %v472
  %v474 = vlaneseq
  %v475 = vshrl.u32 %v474, 7
  %v476 = vsub.s32 1, %v475
  %v477 = vrot.slane %v461, %v476
  %v483 = vcombine.high %v412, %v412
  %v485 = vmul.f32 %v465, %v412
  %v486 = vmul.f32 %v469, %v483
  %v487 = vmul.f32 %v473, %v412
  %v488 = vmul.f32 %v477, %v483
  %v489 = vadd.f32 %v359, %v485
  %v490 = vadd.f32 %v360, %v486
  %v491 = vadd.f32 %v361, %v487
  %v492 = vadd.f32 %v362, %v488
  %v493 = vadd.f32 %v406, %v408
  %v496 = vunpack.c.l.s4 1966171168
  %v497 = vunpack.c.0.s8 %v496
  %v498 = vlaneseq
  %v499 = vshrl.u32 %v498, 7
  %v500 = vsub.s32 %v497, %v499
  %v501 = vrot.slane %v493, %v500
  %v502 = vcombine.high %v501, %v501
  %v503 = vadd.f32 %v410, %v412
  %v504 = vlaneseq
  %v505 = vshrl.u32 %v504, 7
  %v506 = vsub.s32 0, %v505
  %v507 = vrot.slane %v501, %v506
  %v508 = vlaneseq
  %v509 = vshrl.u32 %v508, 7
  %v510 = vsub.s32 1, %v509
  %v511 = vrot.slane %v501, %v510
  %v512 = vlaneseq
  %v513 = vshrl.u32 %v512, 7
  %v514 = vsub.s32 0, %v513
  %v515 = vrot.slane %v502, %v514
  %v516 = vlaneseq
  %v517 = vshrl.u32 %v516, 7
  %v518 = vsub.s32 1, %v517
  %v519 = vrot.slane %v502, %v518
  %v525 = vcombine.high %v503, %v503
  %v527 = vmul.f32 %v507, %v503
  %v528 = vmul.f32 %v511, %v525
  %v529 = vmul.f32 %v515, %v503
  %v530 = vmul.f32 %v519, %v525
  %v531 = vadd.f32 %v401, %v527
  %v532 = vadd.f32 %v402, %v528
  %v533 = vadd.f32 %v403, %v529
  %v534 = vadd.f32 %v404, %v530
  %v535 = vsub.f32 %v449, %v489
  %v536 = vsub.f32 %v450, %v490
  %v537 = vsub.f32 %v451, %v491
  %v538 = vsub.f32 %v452, %v492
  %v543 = vcombine.low %v535, %v536
  %v544 = vcombine.low %v537, %v538
  %547 = vst [vmem:[%s4] sm:$0xff] %v543
  %548 = vst [vmem:[%s4 + $0x8] sm:$0xff] %v544
  %v549 = vsub.f32 %v531, %v449
  %v550 = vsub.f32 %v532, %v450
  %v551 = vsub.f32 %v533, %v451
  %v552 = vsub.f32 %v534, %v452
  %v553 = vsub.f32 %v549, %v489
  %v554 = vsub.f32 %v550, %v490
  %v555 = vsub.f32 %v551, %v491
  %v556 = vsub.f32 %v552, %v492
  %v561 = vcombine.low %v553, %v554
  %v562 = vcombine.low %v555, %v556
  %565 = vst [vmem:[%s5] sm:$0xff] %v561
  %566 = vst [vmem:[%s5 + $0x8] sm:$0xff] %v562
  // Predicated region
  $region18: #{spectral_conv3d.1} parent=0 // pred_check
    _
  $region19: #{spectral_conv3d.1} parent=0 // pred_check_branch
    %568 = sbr.rel (0) target = $region21
  $region20: #{spectral_conv3d.1} parent=0 // pred_region
    _
  $region21: #{spectral_conv3d.1} parent=0 // pred_fallthru
    _
  // Predicated region
  $region22: #{spectral_conv3d.1} parent=0 // pred_check
    _
  $region23: #{spectral_conv3d.1} parent=0 // pred_check_branch
    %570 = sbr.rel (0) target = $region25
  $region24: #{spectral_conv3d.1} parent=0 // pred_region
    _
  $region25: #{spectral_conv3d.1} parent=0 // pred_fallthru
    _
  // Predicated region
  $region26: #{spectral_conv3d.1} parent=0 // pred_check
    _
  $region27: #{spectral_conv3d.1} parent=0 // pred_check_branch
    %572 = sbr.rel (0) target = $region29
  $region28: #{spectral_conv3d.1} parent=0 // pred_region
    _
  $region29: #{spectral_conv3d.1} parent=0 // pred_fallthru
    _
  // Predicated region
  $region30: #{spectral_conv3d.1} parent=0 // pred_check
    _
  $region31: #{spectral_conv3d.1} parent=0 // pred_check_branch
    %574 = sbr.rel (0) target = $region33
  $region32: #{spectral_conv3d.1} parent=0 // pred_region
    _
  $region33: #{spectral_conv3d.1} parent=0 // pred_fallthru
    _

// kernel: reverse.1
$region0: #{reverse.1}
  #allocation0 [shape = 's32[1]{0}', space=sflag, size = 0x4, scoped, tag = 'scoped memory for reverse.1']
  %s0 = inlined_call_operand.vmem [shape: f32[2,4,16,16,7], index: 0, kind: input, shape index: {}]
  %s1 = inlined_call_operand.vmem [shape: f32[2,4,16,16,7], index: 1, kind: output, shape index: {}]
  %s2 = scalar_lea.vmem %s0, 96
  %v3 = vld [vmem:[%s2] sm:$0xff]
  %4 = vst [vmem:[%s1] sm:$0xff] %v3
  %s5 = scalar_lea.vmem %s0, 544
  %v6 = vld [vmem:[%s5] sm:$0xff]
  %s7 = scalar_lea.vmem %s1, 448
  %8 = vst [vmem:[%s7] sm:$0xff] %v6
  %s9 = scalar_lea.vmem %s0, 208
  %v10 = vld [vmem:[%s9] sm:$0xff]
  %s11 = scalar_lea.vmem %s1, 112
  %12 = vst [vmem:[%s11] sm:$0xff] %v10
  %s13 = scalar_lea.vmem %s0, 656
  %v14 = vld [vmem:[%s13] sm:$0xff]
  %s15 = scalar_lea.vmem %s1, 560
  %16 = vst [vmem:[%s15] sm:$0xff] %v14
  %s17 = scalar_lea.vmem %s0, 320
  %v18 = vld [vmem:[%s17] sm:$0xff]
  %s19 = scalar_lea.vmem %s1, 224
  %20 = vst [vmem:[%s19] sm:$0xff] %v18
  %s21 = scalar_lea.vmem %s0, 768
  %v22 = vld [vmem:[%s21] sm:$0xff]
  %s23 = scalar_lea.vmem %s1, 672
  %24 = vst [vmem:[%s23] sm:$0xff] %v22
  %s25 = scalar_lea.vmem %s0, 432
  %v26 = vld [vmem:[%s25] sm:$0xff]
  %s27 = scalar_lea.vmem %s1, 336
  %28 = vst [vmem:[%s27] sm:$0xff] %v26
  %s29 = scalar_lea.vmem %s0, 880
  %v30 = vld [vmem:[%s29] sm:$0xff]
  %s31 = scalar_lea.vmem %s1, 784
  %32 = vst [vmem:[%s31] sm:$0xff] %v30
  %s33 = scalar_lea.vmem %s0, 80
  %v34 = vld [vmem:[%s33] sm:$0xff]
  %s35 = scalar_lea.vmem %s1, 16
  %36 = vst [vmem:[%s35] sm:$0xff] %v34
  %s37 = scalar_lea.vmem %s0, 528
  %v38 = vld [vmem:[%s37] sm:$0xff]
  %s39 = scalar_lea.vmem %s1, 464
  %40 = vst [vmem:[%s39] sm:$0xff] %v38
  %s41 = scalar_lea.vmem %s0, 192
  %v42 = vld [vmem:[%s41] sm:$0xff]
  %s43 = scalar_lea.vmem %s1, 128
  %44 = vst [vmem:[%s43] sm:$0xff] %v42
  %s45 = scalar_lea.vmem %s0, 640
  %v46 = vld [vmem:[%s45] sm:$0xff]
  %s47 = scalar_lea.vmem %s1, 576
  %48 = vst [vmem:[%s47] sm:$0xff] %v46
  %s49 = scalar_lea.vmem %s0, 304
  %v50 = vld [vmem:[%s49] sm:$0xff]
  %s51 = scalar_lea.vmem %s1, 240
  %52 = vst [vmem:[%s51] sm:$0xff] %v50
  %s53 = scalar_lea.vmem %s0, 752
  %v54 = vld [vmem:[%s53] sm:$0xff]
  %s55 = scalar_lea.vmem %s1, 688
  %56 = vst [vmem:[%s55] sm:$0xff] %v54
  %s57 = scalar_lea.vmem %s0, 416
  %v58 = vld [vmem:[%s57] sm:$0xff]
  %s59 = scalar_lea.vmem %s1, 352
  %60 = vst [vmem:[%s59] sm:$0xff] %v58
  %s61 = scalar_lea.vmem %s0, 864
  %v62 = vld [vmem:[%s61] sm:$0xff]
  %s63 = scalar_lea.vmem %s1, 800
  %64 = vst [vmem:[%s63] sm:$0xff] %v62
  %s65 = scalar_lea.vmem %s0, 64
  %v66 = vld [vmem:[%s65] sm:$0xff]
  %s67 = scalar_lea.vmem %s1, 32
  %68 = vst [vmem:[%s67] sm:$0xff] %v66
  %s69 = scalar_lea.vmem %s0, 512
  %v70 = vld [vmem:[%s69] sm:$0xff]
  %s71 = scalar_lea.vmem %s1, 480
  %72 = vst [vmem:[%s71] sm:$0xff] %v70
  %s73 = scalar_lea.vmem %s0, 176
  %v74 = vld [vmem:[%s73] sm:$0xff]
  %s75 = scalar_lea.vmem %s1, 144
  %76 = vst [vmem:[%s75] sm:$0xff] %v74
  %s77 = scalar_lea.vmem %s0, 624
  %v78 = vld [vmem:[%s77] sm:$0xff]
  %s79 = scalar_lea.vmem %s1, 592
  %80 = vst [vmem:[%s79] sm:$0xff] %v78
  %s81 = scalar_lea.vmem %s0, 288
  %v82 = vld [vmem:[%s81] sm:$0xff]
  %s83 = scalar_lea.vmem %s1, 256
  %84 = vst [vmem:[%s83] sm:$0xff] %v82
  %s85 = scalar_lea.vmem %s0, 736
  %v86 = vld [vmem:[%s85] sm:$0xff]
  %s87 = scalar_lea.vmem %s1, 704
  %88 = vst [vmem:[%s87] sm:$0xff] %v86
  %s89 = scalar_lea.vmem %s0, 400
  %v90 = vld [vmem:[%s89] sm:$0xff]
  %s91 = scalar_lea.vmem %s1, 368
  %92 = vst [vmem:[%s91] sm:$0xff] %v90
  %s93 = scalar_lea.vmem %s0, 848
  %v94 = vld [vmem:[%s93] sm:$0xff]
  %s95 = scalar_lea.vmem %s1, 816
  %96 = vst [vmem:[%s95] sm:$0xff] %v94
  %s97 = scalar_lea.vmem %s0, 48
  %v98 = vld [vmem:[%s97] sm:$0xff]
  %s99 = scalar_lea.vmem %s1, 48
  %100 = vst [vmem:[%s99] sm:$0xff] %v98
  %s101 = scalar_lea.vmem %s0, 496
  %v102 = vld [vmem:[%s101] sm:$0xff]
  %s103 = scalar_lea.vmem %s1, 496
  %104 = vst [vmem:[%s103] sm:$0xff] %v102
  %s105 = scalar_lea.vmem %s0, 160
  %v106 = vld [vmem:[%s105] sm:$0xff]
  %s107 = scalar_lea.vmem %s1, 160
  %108 = vst [vmem:[%s107] sm:$0xff] %v106
  %s109 = scalar_lea.vmem %s0, 608
  %v110 = vld [vmem:[%s109] sm:$0xff]
  %s111 = scalar_lea.vmem %s1, 608
  %112 = vst [vmem:[%s111] sm:$0xff] %v110
  %s113 = scalar_lea.vmem %s0, 272
  %v114 = vld [vmem:[%s113] sm:$0xff]
  %s115 = scalar_lea.vmem %s1, 272
  %116 = vst [vmem:[%s115] sm:$0xff] %v114
  %s117 = scalar_lea.vmem %s0, 720
  %v118 = vld [vmem:[%s117] sm:$0xff]
  %s119 = scalar_lea.vmem %s1, 720
  %120 = vst [vmem:[%s119] sm:$0xff] %v118
  %s121 = scalar_lea.vmem %s0, 384
  %v122 = vld [vmem:[%s121] sm:$0xff]
  %s123 = scalar_lea.vmem %s1, 384
  %124 = vst [vmem:[%s123] sm:$0xff] %v122
  %s125 = scalar_lea.vmem %s0, 832
  %v126 = vld [vmem:[%s125] sm:$0xff]
  %s127 = scalar_lea.vmem %s1, 832
  %128 = vst [vmem:[%s127] sm:$0xff] %v126
  %s129 = scalar_lea.vmem %s0, 32
  %v130 = vld [vmem:[%s129] sm:$0xff]
  %s131 = scalar_lea.vmem %s1, 64
  %132 = vst [vmem:[%s131] sm:$0xff] %v130
  %s133 = scalar_lea.vmem %s0, 480
  %v134 = vld [vmem:[%s133] sm:$0xff]
  %s135 = scalar_lea.vmem %s1, 512
  %136 = vst [vmem:[%s135] sm:$0xff] %v134
  %s137 = scalar_lea.vmem %s0, 144
  %v138 = vld [vmem:[%s137] sm:$0xff]
  %s139 = scalar_lea.vmem %s1, 176
  %140 = vst [vmem:[%s139] sm:$0xff] %v138
  %s141 = scalar_lea.vmem %s0, 592
  %v142 = vld [vmem:[%s141] sm:$0xff]
  %s143 = scalar_lea.vmem %s1, 624
  %144 = vst [vmem:[%s143] sm:$0xff] %v142
  %s145 = scalar_lea.vmem %s0, 256
  %v146 = vld [vmem:[%s145] sm:$0xff]
  %s147 = scalar_lea.vmem %s1, 288
  %148 = vst [vmem:[%s147] sm:$0xff] %v146
  %s149 = scalar_lea.vmem %s0, 704
  %v150 = vld [vmem:[%s149] sm:$0xff]
  %s151 = scalar_lea.vmem %s1, 736
  %152 = vst [vmem:[%s151] sm:$0xff] %v150
  %s153 = scalar_lea.vmem %s0, 368
  %v154 = vld [vmem:[%s153] sm:$0xff]
  %s155 = scalar_lea.vmem %s1, 400
  %156 = vst [vmem:[%s155] sm:$0xff] %v154
  %s157 = scalar_lea.vmem %s0, 816
  %v158 = vld [vmem:[%s157] sm:$0xff]
  %s159 = scalar_lea.vmem %s1, 848
  %160 = vst [vmem:[%s159] sm:$0xff] %v158
  %s161 = scalar_lea.vmem %s0, 16
  %v162 = vld [vmem:[%s161] sm:$0xff]
  %s163 = scalar_lea.vmem %s1, 80
  %164 = vst [vmem:[%s163] sm:$0xff] %v162
  %s165 = scalar_lea.vmem %s0, 464
  %v166 = vld [vmem:[%s165] sm:$0xff]
  %s167 = scalar_lea.vmem %s1, 528
  %168 = vst [vmem:[%s167] sm:$0xff] %v166
  %s169 = scalar_lea.vmem %s0, 128
  %v170 = vld [vmem:[%s169] sm:$0xff]
  %s171 = scalar_lea.vmem %s1, 192
  %172 = vst [vmem:[%s171] sm:$0xff] %v170
  %s173 = scalar_lea.vmem %s0, 576
  %v174 = vld [vmem:[%s173] sm:$0xff]
  %s175 = scalar_lea.vmem %s1, 640
  %176 = vst [vmem:[%s175] sm:$0xff] %v174
  %s177 = scalar_lea.vmem %s0, 240
  %v178 = vld [vmem:[%s177] sm:$0xff]
  %s179 = scalar_lea.vmem %s1, 304
  %180 = vst [vmem:[%s179] sm:$0xff] %v178
  %s181 = scalar_lea.vmem %s0, 688
  %v182 = vld [vmem:[%s181] sm:$0xff]
  %s183 = scalar_lea.vmem %s1, 752
  %184 = vst [vmem:[%s183] sm:$0xff] %v182
  %s185 = scalar_lea.vmem %s0, 352
  %v186 = vld [vmem:[%s185] sm:$0xff]
  %s187 = scalar_lea.vmem %s1, 416
  %188 = vst [vmem:[%s187] sm:$0xff] %v186
  %s189 = scalar_lea.vmem %s0, 800
  %v190 = vld [vmem:[%s189] sm:$0xff]
  %s191 = scalar_lea.vmem %s1, 864
  %192 = vst [vmem:[%s191] sm:$0xff] %v190
  %v193 = vld [vmem:[%s0] sm:$0xff]
  %s194 = scalar_lea.vmem %s1, 96
  %195 = vst [vmem:[%s194] sm:$0xff] %v193
  %s196 = scalar_lea.vmem %s0, 448
  %v197 = vld [vmem:[%s196] sm:$0xff]
  %s198 = scalar_lea.vmem %s1, 544
  %199 = vst [vmem:[%s198] sm:$0xff] %v197
  %s200 = scalar_lea.vmem %s0, 112
  %v201 = vld [vmem:[%s200] sm:$0xff]
  %s202 = scalar_lea.vmem %s1, 208
  %203 = vst [vmem:[%s202] sm:$0xff] %v201
  %s204 = scalar_lea.vmem %s0, 560
  %v205 = vld [vmem:[%s204] sm:$0xff]
  %s206 = scalar_lea.vmem %s1, 656
  %207 = vst [vmem:[%s206] sm:$0xff] %v205
  %s208 = scalar_lea.vmem %s0, 224
  %v209 = vld [vmem:[%s208] sm:$0xff]
  %s210 = scalar_lea.vmem %s1, 320
  %211 = vst [vmem:[%s210] sm:$0xff] %v209
  %s212 = scalar_lea.vmem %s0, 672
  %v213 = vld [vmem:[%s212] sm:$0xff]
  %s214 = scalar_lea.vmem %s1, 768
  %215 = vst [vmem:[%s214] sm:$0xff] %v213
  %s216 = scalar_lea.vmem %s0, 336
  %v217 = vld [vmem:[%s216] sm:$0xff]
  %s218 = scalar_lea.vmem %s1, 432
  %219 = vst [vmem:[%s218] sm:$0xff] %v217
  %s220 = scalar_lea.vmem %s0, 784
  %v221 = vld [vmem:[%s220] sm:$0xff]
  %s222 = scalar_lea.vmem %s1, 880
  %223 = vst [vmem:[%s222] sm:$0xff] %v221
  %s224 = scalar_lea.vmem %s0, 104
  %v225 = vld [vmem:[%s224] sm:$0xff]
  %s226 = scalar_lea.vmem %s1, 8
  %227 = vst [vmem:[%s226] sm:$0xff] %v225
  %s228 = scalar_lea.vmem %s0, 552
  %v229 = vld [vmem:[%s228] sm:$0xff]
  %s230 = scalar_lea.vmem %s1, 456
  %231 = vst [vmem:[%s230] sm:$0xff] %v229
  %s232 = scalar_lea.vmem %s0, 216
  %v233 = vld [vmem:[%s232] sm:$0xff]
  %s234 = scalar_lea.vmem %s1, 120
  %235 = vst [vmem:[%s234] sm:$0xff] %v233
  %s236 = scalar_lea.vmem %s0, 664
  %v237 = vld [vmem:[%s236] sm:$0xff]
  %s238 = scalar_lea.vmem %s1, 568
  %239 = vst [vmem:[%s238] sm:$0xff] %v237
  %s240 = scalar_lea.vmem %s0, 328
  %v241 = vld [vmem:[%s240] sm:$0xff]
  %s242 = scalar_lea.vmem %s1, 232
  %243 = vst [vmem:[%s242] sm:$0xff] %v241
  %s244 = scalar_lea.vmem %s0, 776
  %v245 = vld [vmem:[%s244] sm:$0xff]
  %s246 = scalar_lea.vmem %s1, 680
  %247 = vst [vmem:[%s246] sm:$0xff] %v245
  %s248 = scalar_lea.vmem %s0, 440
  %v249 = vld [vmem:[%s248] sm:$0xff]
  %s250 = scalar_lea.vmem %s1, 344
  %251 = vst [vmem:[%s250] sm:$0xff] %v249
  %s252 = scalar_lea.vmem %s0, 888
  %v253 = vld [vmem:[%s252] sm:$0xff]
  %s254 = scalar_lea.vmem %s1, 792
  %255 = vst [vmem:[%s254] sm:$0xff] %v253
  %s256 = scalar_lea.vmem %s0, 88
  %v257 = vld [vmem:[%s256] sm:$0xff]
  %s258 = scalar_lea.vmem %s1, 24
  %259 = vst [vmem:[%s258] sm:$0xff] %v257
  %s260 = scalar_lea.vmem %s0, 536
  %v261 = vld [vmem:[%s260] sm:$0xff]
  %s262 = scalar_lea.vmem %s1, 472
  %263 = vst [vmem:[%s262] sm:$0xff] %v261
  %s264 = scalar_lea.vmem %s0, 200
  %v265 = vld [vmem:[%s264] sm:$0xff]
  %s266 = scalar_lea.vmem %s1, 136
  %267 = vst [vmem:[%s266] sm:$0xff] %v265
  %s268 = scalar_lea.vmem %s0, 648
  %v269 = vld [vmem:[%s268] sm:$0xff]
  %s270 = scalar_lea.vmem %s1, 584
  %271 = vst [vmem:[%s270] sm:$0xff] %v269
  %s272 = scalar_lea.vmem %s0, 312
  %v273 = vld [vmem:[%s272] sm:$0xff]
  %s274 = scalar_lea.vmem %s1, 248
  %275 = vst [vmem:[%s274] sm:$0xff] %v273
  %s276 = scalar_lea.vmem %s0, 760
  %v277 = vld [vmem:[%s276] sm:$0xff]
  %s278 = scalar_lea.vmem %s1, 696
  %279 = vst [vmem:[%s278] sm:$0xff] %v277
  %s280 = scalar_lea.vmem %s0, 424
  %v281 = vld [vmem:[%s280] sm:$0xff]
  %s282 = scalar_lea.vmem %s1, 360
  %283 = vst [vmem:[%s282] sm:$0xff] %v281
  %s284 = scalar_lea.vmem %s0, 872
  %v285 = vld [vmem:[%s284] sm:$0xff]
  %s286 = scalar_lea.vmem %s1, 808
  %287 = vst [vmem:[%s286] sm:$0xff] %v285
  %s288 = scalar_lea.vmem %s0, 72
  %v289 = vld [vmem:[%s288] sm:$0xff]
  %s290 = scalar_lea.vmem %s1, 40
  %291 = vst [vmem:[%s290] sm:$0xff] %v289
  %s292 = scalar_lea.vmem %s0, 520
  %v293 = vld [vmem:[%s292] sm:$0xff]
  %s294 = scalar_lea.vmem %s1, 488
  %295 = vst [vmem:[%s294] sm:$0xff] %v293
  %s296 = scalar_lea.vmem %s0, 184
  %v297 = vld [vmem:[%s296] sm:$0xff]
  %s298 = scalar_lea.vmem %s1, 152
  %299 = vst [vmem:[%s298] sm:$0xff] %v297
  %s300 = scalar_lea.vmem %s0, 632
  %v301 = vld [vmem:[%s300] sm:$0xff]
  %s302 = scalar_lea.vmem %s1, 600
  %303 = vst [vmem:[%s302] sm:$0xff] %v301
  %s304 = scalar_lea.vmem %s0, 296
  %v305 = vld [vmem:[%s304] sm:$0xff]
  %s306 = scalar_lea.vmem %s1, 264
  %307 = vst [vmem:[%s306] sm:$0xff] %v305
  %s308 = scalar_lea.vmem %s0, 744
  %v309 = vld [vmem:[%s308] sm:$0xff]
  %s310 = scalar_lea.vmem %s1, 712
  %311 = vst [vmem:[%s310] sm:$0xff] %v309
  %s312 = scalar_lea.vmem %s0, 408
  %v313 = vld [vmem:[%s312] sm:$0xff]
  %s314 = scalar_lea.vmem %s1, 376
  %315 = vst [vmem:[%s314] sm:$0xff] %v313
  %s316 = scalar_lea.vmem %s0, 856
  %v317 = vld [vmem:[%s316] sm:$0xff]
  %s318 = scalar_lea.vmem %s1, 824
  %319 = vst [vmem:[%s318] sm:$0xff] %v317
  %s320 = scalar_lea.vmem %s0, 56
  %v321 = vld [vmem:[%s320] sm:$0xff]
  %s322 = scalar_lea.vmem %s1, 56
  %323 = vst [vmem:[%s322] sm:$0xff] %v321
  %s324 = scalar_lea.vmem %s0, 504
  %v325 = vld [vmem:[%s324] sm:$0xff]
  %s326 = scalar_lea.vmem %s1, 504
  %327 = vst [vmem:[%s326] sm:$0xff] %v325
  %s328 = scalar_lea.vmem %s0, 168
  %v329 = vld [vmem:[%s328] sm:$0xff]
  %s330 = scalar_lea.vmem %s1, 168
  %331 = vst [vmem:[%s330] sm:$0xff] %v329
  %s332 = scalar_lea.vmem %s0, 616
  %v333 = vld [vmem:[%s332] sm:$0xff]
  %s334 = scalar_lea.vmem %s1, 616
  %335 = vst [vmem:[%s334] sm:$0xff] %v333
  %s336 = scalar_lea.vmem %s0, 280
  %v337 = vld [vmem:[%s336] sm:$0xff]
  %s338 = scalar_lea.vmem %s1, 280
  %339 = vst [vmem:[%s338] sm:$0xff] %v337
  %s340 = scalar_lea.vmem %s0, 728
  %v341 = vld [vmem:[%s340] sm:$0xff]
  %s342 = scalar_lea.vmem %s1, 728
  %343 = vst [vmem:[%s342] sm:$0xff] %v341
  %s344 = scalar_lea.vmem %s0, 392
  %v345 = vld [vmem:[%s344] sm:$0xff]
  %s346 = scalar_lea.vmem %s1, 392
  %347 = vst [vmem:[%s346] sm:$0xff] %v345
  %s348 = scalar_lea.vmem %s0, 840
  %v349 = vld [vmem:[%s348] sm:$0xff]
  %s350 = scalar_lea.vmem %s1, 840
  %351 = vst [vmem:[%s350] sm:$0xff] %v349
  %s352 = scalar_lea.vmem %s0, 40
  %v353 = vld [vmem:[%s352] sm:$0xff]
  %s354 = scalar_lea.vmem %s1, 72
  %355 = vst [vmem:[%s354] sm:$0xff] %v353
  %s356 = scalar_lea.vmem %s0, 488
  %v357 = vld [vmem:[%s356] sm:$0xff]
  %s358 = scalar_lea.vmem %s1, 520
  %359 = vst [vmem:[%s358] sm:$0xff] %v357
  %s360 = scalar_lea.vmem %s0, 152
  %v361 = vld [vmem:[%s360] sm:$0xff]
  %s362 = scalar_lea.vmem %s1, 184
  %363 = vst [vmem:[%s362] sm:$0xff] %v361
  %s364 = scalar_lea.vmem %s0, 600
  %v365 = vld [vmem:[%s364] sm:$0xff]
  %s366 = scalar_lea.vmem %s1, 632
  %367 = vst [vmem:[%s366] sm:$0xff] %v365
  %s368 = scalar_lea.vmem %s0, 264
  %v369 = vld [vmem:[%s368] sm:$0xff]
  %s370 = scalar_lea.vmem %s1, 296
  %371 = vst [vmem:[%s370] sm:$0xff] %v369
  %s372 = scalar_lea.vmem %s0, 712
  %v373 = vld [vmem:[%s372] sm:$0xff]
  %s374 = scalar_lea.vmem %s1, 744
  %375 = vst [vmem:[%s374] sm:$0xff] %v373
  %s376 = scalar_lea.vmem %s0, 376
  %v377 = vld [vmem:[%s376] sm:$0xff]
  %s378 = scalar_lea.vmem %s1, 408
  %379 = vst [vmem:[%s378] sm:$0xff] %v377
  %s380 = scalar_lea.vmem %s0, 824
  %v381 = vld [vmem:[%s380] sm:$0xff]
  %s382 = scalar_lea.vmem %s1, 856
  %383 = vst [vmem:[%s382] sm:$0xff] %v381
  %s384 = scalar_lea.vmem %s0, 24
  %v385 = vld [vmem:[%s384] sm:$0xff]
  %s386 = scalar_lea.vmem %s1, 88
  %387 = vst [vmem:[%s386] sm:$0xff] %v385
  %s388 = scalar_lea.vmem %s0, 472
  %v389 = vld [vmem:[%s388] sm:$0xff]
  %s390 = scalar_lea.vmem %s1, 536
  %391 = vst [vmem:[%s390] sm:$0xff] %v389
  %s392 = scalar_lea.vmem %s0, 136
  %v393 = vld [vmem:[%s392] sm:$0xff]
  %s394 = scalar_lea.vmem %s1, 200
  %395 = vst [vmem:[%s394] sm:$0xff] %v393
  %s396 = scalar_lea.vmem %s0, 584
  %v397 = vld [vmem:[%s396] sm:$0xff]
  %s398 = scalar_lea.vmem %s1, 648
  %399 = vst [vmem:[%s398] sm:$0xff] %v397
  %s400 = scalar_lea.vmem %s0, 248
  %v401 = vld [vmem:[%s400] sm:$0xff]
  %s402 = scalar_lea.vmem %s1, 312
  %403 = vst [vmem:[%s402] sm:$0xff] %v401
  %s404 = scalar_lea.vmem %s0, 696
  %v405 = vld [vmem:[%s404] sm:$0xff]
  %s406 = scalar_lea.vmem %s1, 760
  %407 = vst [vmem:[%s406] sm:$0xff] %v405
  %s408 = scalar_lea.vmem %s0, 360
  %v409 = vld [vmem:[%s408] sm:$0xff]
  %s410 = scalar_lea.vmem %s1, 424
  %411 = vst [vmem:[%s410] sm:$0xff] %v409
  %s412 = scalar_lea.vmem %s0, 808
  %v413 = vld [vmem:[%s412] sm:$0xff]
  %s414 = scalar_lea.vmem %s1, 872
  %415 = vst [vmem:[%s414] sm:$0xff] %v413
  %s416 = scalar_lea.vmem %s0, 8
  %v417 = vld [vmem:[%s416] sm:$0xff]
  %s418 = scalar_lea.vmem %s1, 104
  %419 = vst [vmem:[%s418] sm:$0xff] %v417
  %s420 = scalar_lea.vmem %s0, 456
  %v421 = vld [vmem:[%s420] sm:$0xff]
  %s422 = scalar_lea.vmem %s1, 552
  %423 = vst [vmem:[%s422] sm:$0xff] %v421
  %s424 = scalar_lea.vmem %s0, 120
  %v425 = vld [vmem:[%s424] sm:$0xff]
  %s426 = scalar_lea.vmem %s1, 216
  %427 = vst [vmem:[%s426] sm:$0xff] %v425
  %s428 = scalar_lea.vmem %s0, 568
  %v429 = vld [vmem:[%s428] sm:$0xff]
  %s430 = scalar_lea.vmem %s1, 664
  %431 = vst [vmem:[%s430] sm:$0xff] %v429
  %s432 = scalar_lea.vmem %s0, 232
  %v433 = vld [vmem:[%s432] sm:$0xff]
  %s434 = scalar_lea.vmem %s1, 328
  %435 = vst [vmem:[%s434] sm:$0xff] %v433
  %s436 = scalar_lea.vmem %s0, 680
  %v437 = vld [vmem:[%s436] sm:$0xff]
  %s438 = scalar_lea.vmem %s1, 776
  %439 = vst [vmem:[%s438] sm:$0xff] %v437
  %s440 = scalar_lea.vmem %s0, 344
  %v441 = vld [vmem:[%s440] sm:$0xff]
  %s442 = scalar_lea.vmem %s1, 440
  %443 = vst [vmem:[%s442] sm:$0xff] %v441
  %s444 = scalar_lea.vmem %s0, 792
  %v445 = vld [vmem:[%s444] sm:$0xff]
  %s446 = scalar_lea.vmem %s1, 888
  %447 = vst [vmem:[%s446] sm:$0xff] %v445

</llo_original>
